<compile_context>
chip_gen: v5e
topology: v5e:2x2
jax: 0.10.0
libtpu: 0.0.40
codegen_flags: <defaults>
</compile_context>

<pallas_src>
import numpy as np
import jax
import jax.numpy as jnp
from jax.experimental import pallas as pl
from jax.experimental.pallas import tpu as pltpu


# ---------------------------------------------------------------------------
# Fused kernel: Radial MLP + neighbor contraction, per (batch, n_out tile).
#
#   rbf_ref : (TILE_NO, N, R)  radial-basis features of TILE_NO output points
#   t3_ref  : (3, N, C)        in_dict[1] with the m-axis leading (lane = C)
#   w1t/b1/w2t/b2              Radial MLP params (resident in VMEM)
#   out_ref : (3, TILE_NO, C)  lane-dense output block (last dim = C, not 3)
#
#   out[i, b, d] = sum_c  R[b, c, d] * T3[i, c, d]
# ---------------------------------------------------------------------------
def fused_conv_kernel(rbf_ref, t3_ref, w1t_ref, b1_ref, w2t_ref, b2_ref, out_ref):
    tile_no, n_in, rdim = rbf_ref.shape
    n_chan = w2t_ref.shape[1]

    # ---- Radial MLP on the tile; R stays entirely in VMEM / vregs. ----
    # TODO(synk): on v6e/v7x, casting rbf/W1 to bf16 (f32 accumulation) would
    # halve the dominant HBM read; kept f32 here for exact reference parity.
    x = rbf_ref[...].reshape(tile_no * n_in, rdim)
    h = jnp.dot(x, w1t_ref[...], preferred_element_type=jnp.float32) + b1_ref[...]
    h = jnp.maximum(h, 0.0)
    r = jnp.dot(h, w2t_ref[...], preferred_element_type=jnp.float32) + b2_ref[...]
    r = r.reshape(tile_no, n_in, n_chan)              # (TILE_NO, N, C)

    # ---- Neighbor contraction: VPU broadcast-multiply + sublane reduce over
    # n_in.  (Per-channel (N,N)@(N,3) matmuls would use <3% of the MXU and
    # force masked 3-wide stores; this keeps the lane dim = C.)
    for i in range(3):                                # statically unrolled
        out_ref[i, :, :] = jnp.sum(r * t3_ref[i, :, :][None, :, :], axis=1)


def _choose_tile_no(n, r, h, c, budget_bytes=8 << 20):
    """Largest divisor of n (a multiple of 8, or n itself) whose per-step
    VMEM footprint (double-buffered rbf block + MLP intermediates + output
    block) fits inside `budget_bytes` (f32)."""
    per_row = 4 * (3 * n * r      # rbf block (double-buffered) + loaded value
                   + n * h        # hidden activations
                   + 2 * n * c    # radial output + elementwise product
                   + 2 * 3 * c)   # output block, double buffered
    want = max(1, budget_bytes // max(per_row, 1))
    best = n
    for t in range(n, 0, -1):
        if n % t:
            continue
        if t != n and t % 8 != 0:
            continue
        best = t
        if t <= want:
            break
    return best


# ---------------------------------------------------------------------------
# Full Convolution.forward for ranks_in=[1], ranks_out=[1]
# ---------------------------------------------------------------------------
def convolution_forward(in_dict, rbf, rij, params):
    w1, b1, w2, b2 = params
    B, N, N2, R = rbf.shape
    assert N == N2
    H = w1.shape[0]
    C = w2.shape[0]

    t = in_dict[1]                                    # (B, N, C, 3)
    # One-off layout fix on the SMALL feature tensor (B*N*C*3 elements) so the
    # kernel's RHS / output are lane-dense over C.  The big (B,N,N,C) radial
    # output is never materialized in HBM.
    t3 = jnp.transpose(t, (0, 3, 1, 2))               # (B, 3, N, C)

    tile_no = _choose_tile_no(N, R, H, C)
    grid = (B, N // tile_no)

    out3 = pl.pallas_call(
        fused_conv_kernel,
        out_shape=jax.ShapeDtypeStruct((B, 3, N, C), jnp.float32),
        grid=grid,
        in_specs=[
            pl.BlockSpec((None, tile_no, N, R), lambda a, j: (a, j, 0, 0)),
            pl.BlockSpec((None, 3, N, C), lambda a, j: (a, 0, 0, 0)),
            pl.BlockSpec((R, H), lambda a, j: (0, 0)),
            pl.BlockSpec((1, H), lambda a, j: (0, 0)),
            pl.BlockSpec((H, C), lambda a, j: (0, 0)),
            pl.BlockSpec((1, C), lambda a, j: (0, 0)),
        ],
        out_specs=pl.BlockSpec((None, 3, tile_no, C), lambda a, j: (a, 0, j, 0)),
        compiler_params=pltpu.CompilerParams(
            dimension_semantics=("parallel", "parallel"),
            vmem_limit_bytes=32 * 1024 * 1024,
        ),
    )(rbf, t3, w1.T, b1.reshape(1, H), w2.T, b2.reshape(1, C))

    out = jnp.transpose(out3, (0, 2, 3, 1))           # (B, N, C, 3)

    # torch.cat of a single-element list is identity.
    out_dict = {1: out}
    return out_dict, rbf, rij

# TODO(synk): default configs with rank_out=0 (empty filter list -> torch.cat([]))
# or rank_out>=2 / rank_in=0 (cg .view() fails and EIJK shape-mismatches the
# einsum) are broken in the reference module itself, so they are not implemented.


# ---------------------------------------------------------------------------
# Pure-JAX reference (mirrors the PyTorch einsums) for a silent sanity check.
# ---------------------------------------------------------------------------
def ref_forward(in_dict, rbf, rij, params):
    w1, b1, w2, b2 = params
    h = jnp.einsum("ijkl,ml->ijkm", rbf, w1) + b1
    h = jnp.maximum(h, 0.0)
    r_out = jnp.einsum("ijkl,ml->ijkm", h, w2) + b2          # (B,N,N,C)
    cg = jnp.eye(3, dtype=jnp.float32).reshape(3, 1, 3)
    y = jnp.ones(rij.shape[:3] + (1,), jnp.float32)          # Harmonic(0)
    f_out = r_out[..., None] * y[..., None, :]               # (B,N,N,C,1)
    out = jnp.einsum("ijk,abcdj,acdk->abdi", cg, f_out, in_dict[1])
    return {1: out}, rbf, rij


if __name__ == "__main__":
    B, N = 2, 8          # batch, number of points
    RBF = 16             # rbf_size (= n_hidden of Radial)
    C = 8                # channels[1]

    key = jax.random.PRNGKey(0)
    k1, k2, k3, k4, k5 = jax.random.split(key, 5)

    # Deterministic parameter init (xavier-normal weights, zero biases).
    H = RBF
    w1 = jax.random.normal(k1, (H, RBF), jnp.float32) * np.sqrt(2.0 / (H + RBF))
    w2 = jax.random.normal(k2, (C, H), jnp.float32) * np.sqrt(2.0 / (C + H))
    b1 = jnp.zeros((H,), jnp.float32)
    b2 = jnp.zeros((C,), jnp.float32)
    params = (w1, b1, w2, b2)

    # Inputs.
    rij = jax.random.normal(k3, (B, N, N, 3), jnp.float32)
    rbf = jax.random.uniform(k4, (B, N, N, RBF), jnp.float32)
    in_dict = {1: jax.random.normal(k5, (B, N, C, 3), jnp.float32)}

    out_dict, rbf_o, rij_o = convolution_forward(in_dict, rbf, rij, params)
    jax.block_until_ready(out_dict[1])

    ref_dict, _, _ = ref_forward(in_dict, rbf, rij, params)
    np.testing.assert_allclose(np.asarray(out_dict[1]),
                               np.asarray(ref_dict[1]),
                               rtol=1e-4, atol=1e-4)
    assert out_dict[1].shape == (B, N, C, 3)

    print("KERNEL_OK")
</pallas_src>

<mosaic_0001>
module attributes {stable_mosaic.version = 11 : i64} {
  func.func @fused_conv_kernel(%arg0: i32, %arg1: i32, %arg2: memref<1x8x8x16xf32, #tpu.memory_space<vmem>>, %arg3: memref<1x3x8x8xf32, #tpu.memory_space<vmem>>, %arg4: memref<16x16xf32, #tpu.memory_space<vmem>>, %arg5: memref<1x16xf32, #tpu.memory_space<vmem>>, %arg6: memref<16x8xf32, #tpu.memory_space<vmem>>, %arg7: memref<1x8xf32, #tpu.memory_space<vmem>>, %arg8: memref<1x3x8x8xf32, #tpu.memory_space<vmem>>) attributes {dimension_semantics = [#tpu.dimension_semantics<parallel>, #tpu.dimension_semantics<parallel>], iteration_bounds = array<i64: 2, 1>, scalar_prefetch = 0 : i64, scratch_operands = 0 : i64, tpu.core_type = #tpu.core_type<tc>, window_params = [{transform_indices = @transform_0, window_bounds = array<i64: 1, 8, 8, 16>}, {transform_indices = @transform_1, window_bounds = array<i64: 1, 3, 8, 8>}, {pipeline_mode = #tpu.pipeline_mode<synchronous>, transform_indices = @transform_2, window_bounds = array<i64: 16, 16>}, {pipeline_mode = #tpu.pipeline_mode<synchronous>, transform_indices = @transform_3, window_bounds = array<i64: 1, 16>}, {pipeline_mode = #tpu.pipeline_mode<synchronous>, transform_indices = @transform_4, window_bounds = array<i64: 16, 8>}, {pipeline_mode = #tpu.pipeline_mode<synchronous>, transform_indices = @transform_5, window_bounds = array<i64: 1, 8>}, {transform_indices = @transform_6, window_bounds = array<i64: 1, 3, 8, 8>}]} {
    %c0 = arith.constant 0 : index
    %c0_0 = arith.constant 0 : index
    %c0_1 = arith.constant 0 : index
    %c0_2 = arith.constant 0 : index
    %0 = vector.load %arg2[%c0, %c0_0, %c0_1, %c0_2] : memref<1x8x8x16xf32, #tpu.memory_space<vmem>>, vector<1x8x8x16xf32>
    %1 = vector.shape_cast %0 : vector<1x8x8x16xf32> to vector<8x8x16xf32>
    %2 = vector.shape_cast %1 : vector<8x8x16xf32> to vector<64x16xf32>
    %c0_3 = arith.constant 0 : index
    %c0_4 = arith.constant 0 : index
    %3 = vector.load %arg4[%c0_3, %c0_4] : memref<16x16xf32, #tpu.memory_space<vmem>>, vector<16x16xf32>
    %cst = arith.constant dense<0.000000e+00> : vector<64x16xf32>
    %4 = tpu.matmul %2, %3, %cst {dimension_numbers = #tpu.dot_dimension_numbers<[1], [0], [0], [1], [0, 0, 1, 1], [], []>} : vector<64x16xf32>, vector<16x16xf32>, vector<64x16xf32> -> vector<64x16xf32>
    %c0_5 = arith.constant 0 : index
    %c0_6 = arith.constant 0 : index
    %5 = vector.load %arg5[%c0_5, %c0_6] : memref<1x16xf32, #tpu.memory_space<vmem>>, vector<1x16xf32>
    %6 = vector.broadcast %5 : vector<1x16xf32> to vector<64x16xf32>
    %7 = arith.addf %4, %6 : vector<64x16xf32>
    %cst_7 = arith.constant 0.000000e+00 : f32
    %8 = vector.broadcast %cst_7 : f32 to vector<64x16xf32>
    %9 = arith.maximumf %7, %8 : vector<64x16xf32>
    %c0_8 = arith.constant 0 : index
    %c0_9 = arith.constant 0 : index
    %10 = vector.load %arg6[%c0_8, %c0_9] : memref<16x8xf32, #tpu.memory_space<vmem>>, vector<16x8xf32>
    %cst_10 = arith.constant dense<0.000000e+00> : vector<64x8xf32>
    %11 = tpu.matmul %9, %10, %cst_10 {dimension_numbers = #tpu.dot_dimension_numbers<[1], [0], [0], [1], [0, 0, 1, 1], [], []>} : vector<64x16xf32>, vector<16x8xf32>, vector<64x8xf32> -> vector<64x8xf32>
    %c0_11 = arith.constant 0 : index
    %c0_12 = arith.constant 0 : index
    %12 = vector.load %arg7[%c0_11, %c0_12] : memref<1x8xf32, #tpu.memory_space<vmem>>, vector<1x8xf32>
    %13 = vector.broadcast %12 : vector<1x8xf32> to vector<64x8xf32>
    %14 = arith.addf %11, %13 : vector<64x8xf32>
    %15 = vector.shape_cast %14 : vector<64x8xf32> to vector<8x8x8xf32>
    %c0_13 = arith.constant 0 : index
    %c0_14 = arith.constant 0 : index
    %c0_15 = arith.constant 0 : index
    %c0_16 = arith.constant 0 : index
    %16 = vector.load %arg3[%c0_13, %c0_14, %c0_15, %c0_16] : memref<1x3x8x8xf32, #tpu.memory_space<vmem>>, vector<1x1x8x8xf32>
    %17 = vector.shape_cast %16 : vector<1x1x8x8xf32> to vector<8x8xf32>
    %18 = vector.shape_cast %17 : vector<8x8xf32> to vector<1x8x8xf32>
    %19 = vector.broadcast %18 : vector<1x8x8xf32> to vector<8x8x8xf32>
    %20 = arith.mulf %15, %19 : vector<8x8x8xf32>
    %cst_17 = arith.constant dense<0.000000e+00> : vector<8x8xf32>
    %21 = vector.multi_reduction <add>, %20, %cst_17 [1] : vector<8x8x8xf32> to vector<8x8xf32>
    %c0_18 = arith.constant 0 : index
    %c0_19 = arith.constant 0 : index
    %c0_20 = arith.constant 0 : index
    %c0_21 = arith.constant 0 : index
    %22 = vector.load %arg8[%c0_18, %c0_19, %c0_20, %c0_21] : memref<1x3x8x8xf32, #tpu.memory_space<vmem>>, vector<1x1x8x8xf32>
    %23 = vector.shape_cast %22 : vector<1x1x8x8xf32> to vector<8x8xf32>
    %24 = vector.shape_cast %21 : vector<8x8xf32> to vector<1x1x8x8xf32>
    tpu.vector_store %arg8[%c0_18, %c0_19, %c0_20, %c0_21], %24 {strides = array<i32>} : memref<1x3x8x8xf32, #tpu.memory_space<vmem>>, vector<1x1x8x8xf32>,
    %c0_22 = arith.constant 0 : index
    %c1 = arith.constant 1 : index
    %c0_23 = arith.constant 0 : index
    %c0_24 = arith.constant 0 : index
    %25 = vector.load %arg3[%c0_22, %c1, %c0_23, %c0_24] : memref<1x3x8x8xf32, #tpu.memory_space<vmem>>, vector<1x1x8x8xf32>
    %26 = vector.shape_cast %25 : vector<1x1x8x8xf32> to vector<8x8xf32>
    %27 = vector.shape_cast %26 : vector<8x8xf32> to vector<1x8x8xf32>
    %28 = vector.broadcast %27 : vector<1x8x8xf32> to vector<8x8x8xf32>
    %29 = arith.mulf %15, %28 : vector<8x8x8xf32>
    %cst_25 = arith.constant dense<0.000000e+00> : vector<8x8xf32>
    %30 = vector.multi_reduction <add>, %29, %cst_25 [1] : vector<8x8x8xf32> to vector<8x8xf32>
    %c0_26 = arith.constant 0 : index
    %c1_27 = arith.constant 1 : index
    %c0_28 = arith.constant 0 : index
    %c0_29 = arith.constant 0 : index
    %31 = vector.load %arg8[%c0_26, %c1_27, %c0_28, %c0_29] : memref<1x3x8x8xf32, #tpu.memory_space<vmem>>, vector<1x1x8x8xf32>
    %32 = vector.shape_cast %31 : vector<1x1x8x8xf32> to vector<8x8xf32>
    %33 = vector.shape_cast %30 : vector<8x8xf32> to vector<1x1x8x8xf32>
    tpu.vector_store %arg8[%c0_26, %c1_27, %c0_28, %c0_29], %33 {strides = array<i32>} : memref<1x3x8x8xf32, #tpu.memory_space<vmem>>, vector<1x1x8x8xf32>,
    %c0_30 = arith.constant 0 : index
    %c2 = arith.constant 2 : index
    %c0_31 = arith.constant 0 : index
    %c0_32 = arith.constant 0 : index
    %34 = vector.load %arg3[%c0_30, %c2, %c0_31, %c0_32] : memref<1x3x8x8xf32, #tpu.memory_space<vmem>>, vector<1x1x8x8xf32>
    %35 = vector.shape_cast %34 : vector<1x1x8x8xf32> to vector<8x8xf32>
    %36 = vector.shape_cast %35 : vector<8x8xf32> to vector<1x8x8xf32>
    %37 = vector.broadcast %36 : vector<1x8x8xf32> to vector<8x8x8xf32>
    %38 = arith.mulf %15, %37 : vector<8x8x8xf32>
    %cst_33 = arith.constant dense<0.000000e+00> : vector<8x8xf32>
    %39 = vector.multi_reduction <add>, %38, %cst_33 [1] : vector<8x8x8xf32> to vector<8x8xf32>
    %c0_34 = arith.constant 0 : index
    %c2_35 = arith.constant 2 : index
    %c0_36 = arith.constant 0 : index
    %c0_37 = arith.constant 0 : index
    %40 = vector.load %arg8[%c0_34, %c2_35, %c0_36, %c0_37] : memref<1x3x8x8xf32, #tpu.memory_space<vmem>>, vector<1x1x8x8xf32>
    %41 = vector.shape_cast %40 : vector<1x1x8x8xf32> to vector<8x8xf32>
    %42 = vector.shape_cast %39 : vector<8x8xf32> to vector<1x1x8x8xf32>
    tpu.vector_store %arg8[%c0_34, %c2_35, %c0_36, %c0_37], %42 {strides = array<i32>} : memref<1x3x8x8xf32, #tpu.memory_space<vmem>>, vector<1x1x8x8xf32>,
    return
  }
  func.func @transform_0(%arg0: i32, %arg1: i32) -> (i32, i32, i32, i32) {
    %c0_i32 = arith.constant 0 : i32
    %c0_i32_0 = arith.constant 0 : i32
    %c0_i32_1 = arith.constant 0 : i32
    return %arg0, %arg1, %c0_i32, %c0_i32_0 : i32, i32, i32, i32
  }
  func.func @transform_1(%arg0: i32, %arg1: i32) -> (i32, i32, i32, i32) {
    %c0_i32 = arith.constant 0 : i32
    %c0_i32_0 = arith.constant 0 : i32
    %c0_i32_1 = arith.constant 0 : i32
    %c0_i32_2 = arith.constant 0 : i32
    return %arg0, %c0_i32, %c0_i32_0, %c0_i32_1 : i32, i32, i32, i32
  }
  func.func @transform_2(%arg0: i32, %arg1: i32) -> (i32, i32) {
    %c0_i32 = arith.constant 0 : i32
    %c0_i32_0 = arith.constant 0 : i32
    %c0_i32_1 = arith.constant 0 : i32
    return %c0_i32, %c0_i32_0 : i32, i32
  }
  func.func @transform_3(%arg0: i32, %arg1: i32) -> (i32, i32) {
    %c0_i32 = arith.constant 0 : i32
    %c0_i32_0 = arith.constant 0 : i32
    %c0_i32_1 = arith.constant 0 : i32
    return %c0_i32, %c0_i32_0 : i32, i32
  }
  func.func @transform_4(%arg0: i32, %arg1: i32) -> (i32, i32) {
    %c0_i32 = arith.constant 0 : i32
    %c0_i32_0 = arith.constant 0 : i32
    %c0_i32_1 = arith.constant 0 : i32
    return %c0_i32, %c0_i32_0 : i32, i32
  }
  func.func @transform_5(%arg0: i32, %arg1: i32) -> (i32, i32) {
    %c0_i32 = arith.constant 0 : i32
    %c0_i32_0 = arith.constant 0 : i32
    %c0_i32_1 = arith.constant 0 : i32
    return %c0_i32, %c0_i32_0 : i32, i32
  }
  func.func @transform_6(%arg0: i32, %arg1: i32) -> (i32, i32, i32, i32) {
    %c0_i32 = arith.constant 0 : i32
    %c0_i32_0 = arith.constant 0 : i32
    %c0_i32_1 = arith.constant 0 : i32
    return %arg0, %c0_i32, %arg1, %c0_i32_0 : i32, i32, i32, i32
  }
}

</mosaic_0001>

<llo_original>
// kernel: tpu_custom_call.1
$region0: #{tpu_custom_call.1}
  #allocation0 [shape = 'u32[]', space=smem, size = 0x4, offset = 0x4, fixed_abs, tag = 'smem constant byte address 0x4 - core index']
  #allocation1 [shape = 'u32[72,128]{1,0:T(1,128)}', space=vmem, size = 0x9000, scoped, tag = 'internal scratch']
  %s0 = inlined_call_operand.hbm [shape: f32[2,8,8,16], index: 0, kind: input, shape index: {}]
  %s1 = inlined_call_operand.hbm [shape: f32[2,3,8,8], index: 1, kind: input, shape index: {}]
  %s2 = inlined_call_operand.vmem [shape: f32[16,16], index: 2, kind: input, shape index: {}]
  %s3 = inlined_call_operand.vmem [shape: f32[1,16], index: 3, kind: input, shape index: {}]
  %s4 = inlined_call_operand.vmem [shape: f32[16,8], index: 4, kind: input, shape index: {}]
  %s5 = inlined_call_operand.vmem [shape: f32[1,8], index: 5, kind: input, shape index: {}]
  %s6 = inlined_call_operand.hbm [shape: f32[2,3,8,8], index: 6, kind: output, shape index: {}]
  %s7 = sld [smem:[#allocation0]]
  $region65: #{tpu_custom_call.1} parent=0
    _
  %s9 = ssub.s32 1, %s7
  %s10 = scalar_select 0, %s9, %s7
  $region1: #{tpu_custom_call.1} parent=0
    #allocation2 [shape = 'u8[65536]{0}', space=vmem, size = 0x10000, scoped, tag = 'input window, operand 0']
    #allocation3 [shape = 's32[2]{0}', space=sflag, size = 0x8, scoped, tag = 'scoped memory for tpu_custom_call.1']
    #allocation4 [shape = 's32[2]{0}', space=sflag, size = 0x8, scoped, tag = 'scoped memory for tpu_custom_call.1']
    #allocation5 [shape = 'u8[24576]{0}', space=vmem, size = 0x6000, scoped, tag = 'input window, operand 1']
    #allocation6 [shape = 's32[2]{0}', space=sflag, size = 0x8, scoped, tag = 'scoped memory for tpu_custom_call.1']
    #allocation7 [shape = 'u8[24576]{0}', space=vmem, size = 0x6000, scoped, tag = 'output window, operand 0']
    %11 = vsyncpa [#allocation3], 0
    %s12 = scalar_lea.sflag [#allocation3], 1
    %13 = vsyncpa %s12, 0
    %14 = vsyncpa [#allocation6], 0
    %s15 = scalar_lea.sflag [#allocation6], 1
    %16 = vsyncpa %s15, 0
    %17 = vsyncpa [#allocation4], 0
    %s18 = scalar_lea.sflag [#allocation4], 1
    %19 = vsyncpa %s18, 0
    loop: start=0, step=1, limit=4
    $region2: #{tpu_custom_call.1} parent=1 // loop_pre_header
      _
    $region3: #{tpu_custom_call.1} parent=1 // loop_header
      %s21 = sphi 0, %s25
      %p22 = scmp.ge.s32.totalorder %s21, 4
      %s28 = sphi 0, %s40
      %s29 = sphi 0, %s36
      %s30 = sphi 0, %s28
      %s31 = sphi 0, %s29
      %s32 = sphi 0, %s30
      %s33 = sphi 0, %s31
      %s45 = sphi 0, %s47
      %s48 = sphi 0, %s45
      %s49 = sphi 0, %s48
      %s65 = sphi 0, %s49
      %s71 = sphi 0, %s73
      %s74 = sphi 0, %s71
      %s75 = sphi 0, %s74
      %s91 = sphi 0, %s75
      %s95 = sphi 0, %s95
      %s97 = sphi 0, %s95
      %s98 = sphi 0, %s97
      %s112 = sphi 0, %s98
      %s116 = sphi 0, %s116
      %s118 = sphi 0, %s116
      %s119 = sphi 0, %s118
      %s133 = sphi 0, %s119
      %s137 = sphi 0, %s137
      %s139 = sphi 0, %s137
      %s140 = sphi 0, %s139
      %s154 = sphi 0, %s140
      %s158 = sphi 0, %s158
      %s160 = sphi 0, %s158
      %s161 = sphi 0, %s160
      %s175 = sphi 0, %s161
      %s183 = sphi 0, %s185
      %s186 = sphi 0, %s183
      %s187 = sphi 0, %s186
      %s203 = sphi 0, %s187
    $region4: #{tpu_custom_call.1} parent=1 // loop_header_branch
      %24 = sbr.rel (%p22) target = $region8
    $region5: #{tpu_custom_call.1} parent=1 // loop_body
      %s26 = ssub.s32 %s21, 1
      %s27 = ssub.s32 %s21, 2
      %s34 = sadd.s32 1, %s29
      %p35 = scmp.ge.s32.totalorder %s34, 1
      %s36 = scalar_select %p35, 0, %s34
      %s37 = sadd.s32 1, %s28
      %s38 = scalar_select %p35, %s37, %s28
      %p39 = scmp.ge.s32.totalorder %s38, 2
      %s40 = scalar_select %p39, 0, %s38
      %s41 = ssub.s32 %s28, %s40
      %s42 = ssub.s32 %s29, %s36
      %s43 = sor.u32 %s41, %s42
      %p44 = scmp.eq.s32.totalorder %s43, 0
      %s46 = sadd.s32 %s45, 1
      %s47 = scalar_select %p44, %s45, %s46
      %p50 = pneg %p44
      %p51 = scmp.eq.s32.totalorder %s21, 1
      %p52 = por %p50, %p51
      %p53 = scmp.ne.s32.totalorder %s45, %s48
      %p54 = scmp.eq.s32.totalorder %s21, 0
      %p55 = por %p53, %p54
      %p56 = scmp.ne.s32.totalorder %s45, %s48
      %p57 = scmp.eq.s32.totalorder %s26, 1
      %p58 = por %p56, %p57
      %p59 = scmp.ne.s32.totalorder %s48, %s49
      %p60 = scmp.eq.s32.totalorder %s26, 0
      %p61 = por %p59, %p60
      %p62 = scmp.ne.s32.totalorder %s48, %s49
      %p63 = scmp.eq.s32.totalorder %s27, 1
      %p64 = por %p62, %p63
      %p66 = scmp.ne.s32.totalorder %s49, %s65
      %p67 = scmp.eq.s32.totalorder %s27, 0
      %p68 = por %p66, %p67
      %s69 = ssub.s32 %s28, %s40
      %p70 = scmp.eq.s32.totalorder %s69, 0
      %s72 = sadd.s32 %s71, 1
      %s73 = scalar_select %p70, %s71, %s72
      %p76 = pneg %p70
      %p77 = scmp.eq.s32.totalorder %s21, 1
      %p78 = por %p76, %p77
      %p79 = scmp.ne.s32.totalorder %s71, %s74
      %p80 = scmp.eq.s32.totalorder %s21, 0
      %p81 = por %p79, %p80
      %p82 = scmp.ne.s32.totalorder %s71, %s74
      %p83 = scmp.eq.s32.totalorder %s26, 1
      %p84 = por %p82, %p83
      %p85 = scmp.ne.s32.totalorder %s74, %s75
      %p86 = scmp.eq.s32.totalorder %s26, 0
      %p87 = por %p85, %p86
      %p88 = scmp.ne.s32.totalorder %s74, %s75
      %p89 = scmp.eq.s32.totalorder %s27, 1
      %p90 = por %p88, %p89
      %p92 = scmp.ne.s32.totalorder %s75, %s91
      %p93 = scmp.eq.s32.totalorder %s27, 0
      %p94 = por %p92, %p93
      %s96 = sadd.s32 %s95, 1
      %p99 = scmp.eq.s32.totalorder %s21, 1
      %p100 = scmp.ne.s32.totalorder %s95, %s97
      %p101 = scmp.eq.s32.totalorder %s21, 0
      %p102 = por %p100, %p101
      %p103 = scmp.ne.s32.totalorder %s95, %s97
      %p104 = scmp.eq.s32.totalorder %s26, 1
      %p105 = por %p103, %p104
      %p106 = scmp.ne.s32.totalorder %s97, %s98
      %p107 = scmp.eq.s32.totalorder %s26, 0
      %p108 = por %p106, %p107
      %p109 = scmp.ne.s32.totalorder %s97, %s98
      %p110 = scmp.eq.s32.totalorder %s27, 1
      %p111 = por %p109, %p110
      %p113 = scmp.ne.s32.totalorder %s98, %s112
      %p114 = scmp.eq.s32.totalorder %s27, 0
      %p115 = por %p113, %p114
      %s117 = sadd.s32 %s116, 1
      %p120 = scmp.eq.s32.totalorder %s21, 1
      %p121 = scmp.ne.s32.totalorder %s116, %s118
      %p122 = scmp.eq.s32.totalorder %s21, 0
      %p123 = por %p121, %p122
      %p124 = scmp.ne.s32.totalorder %s116, %s118
      %p125 = scmp.eq.s32.totalorder %s26, 1
      %p126 = por %p124, %p125
      %p127 = scmp.ne.s32.totalorder %s118, %s119
      %p128 = scmp.eq.s32.totalorder %s26, 0
      %p129 = por %p127, %p128
      %p130 = scmp.ne.s32.totalorder %s118, %s119
      %p131 = scmp.eq.s32.totalorder %s27, 1
      %p132 = por %p130, %p131
      %p134 = scmp.ne.s32.totalorder %s119, %s133
      %p135 = scmp.eq.s32.totalorder %s27, 0
      %p136 = por %p134, %p135
      %s138 = sadd.s32 %s137, 1
      %p141 = scmp.eq.s32.totalorder %s21, 1
      %p142 = scmp.ne.s32.totalorder %s137, %s139
      %p143 = scmp.eq.s32.totalorder %s21, 0
      %p144 = por %p142, %p143
      %p145 = scmp.ne.s32.totalorder %s137, %s139
      %p146 = scmp.eq.s32.totalorder %s26, 1
      %p147 = por %p145, %p146
      %p148 = scmp.ne.s32.totalorder %s139, %s140
      %p149 = scmp.eq.s32.totalorder %s26, 0
      %p150 = por %p148, %p149
      %p151 = scmp.ne.s32.totalorder %s139, %s140
      %p152 = scmp.eq.s32.totalorder %s27, 1
      %p153 = por %p151, %p152
      %p155 = scmp.ne.s32.totalorder %s140, %s154
      %p156 = scmp.eq.s32.totalorder %s27, 0
      %p157 = por %p155, %p156
      %s159 = sadd.s32 %s158, 1
      %p162 = scmp.eq.s32.totalorder %s21, 1
      %p163 = scmp.ne.s32.totalorder %s158, %s160
      %p164 = scmp.eq.s32.totalorder %s21, 0
      %p165 = por %p163, %p164
      %p166 = scmp.ne.s32.totalorder %s158, %s160
      %p167 = scmp.eq.s32.totalorder %s26, 1
      %p168 = por %p166, %p167
      %p169 = scmp.ne.s32.totalorder %s160, %s161
      %p170 = scmp.eq.s32.totalorder %s26, 0
      %p171 = por %p169, %p170
      %p172 = scmp.ne.s32.totalorder %s160, %s161
      %p173 = scmp.eq.s32.totalorder %s27, 1
      %p174 = por %p172, %p173
      %p176 = scmp.ne.s32.totalorder %s161, %s175
      %p177 = scmp.eq.s32.totalorder %s27, 0
      %p178 = por %p176, %p177
      %s179 = ssub.s32 %s28, %s40
      %s180 = ssub.s32 %s29, %s36
      %s181 = sor.u32 %s179, %s180
      %p182 = scmp.eq.s32.totalorder %s181, 0
      %s184 = sadd.s32 %s183, 1
      %s185 = scalar_select %p182, %s183, %s184
      %p188 = pneg %p182
      %p189 = scmp.eq.s32.totalorder %s21, 1
      %p190 = por %p188, %p189
      %p191 = scmp.ne.s32.totalorder %s183, %s186
      %p192 = scmp.eq.s32.totalorder %s21, 0
      %p193 = por %p191, %p192
      %p194 = scmp.ne.s32.totalorder %s183, %s186
      %p195 = scmp.eq.s32.totalorder %s26, 1
      %p196 = por %p194, %p195
      %p197 = scmp.ne.s32.totalorder %s186, %s187
      %p198 = scmp.eq.s32.totalorder %s26, 0
      %p199 = por %p197, %p198
      %p200 = scmp.ne.s32.totalorder %s186, %s187
      %p201 = scmp.eq.s32.totalorder %s27, 1
      %p202 = por %p200, %p201
      %p204 = scmp.ne.s32.totalorder %s187, %s203
      %p205 = scmp.eq.s32.totalorder %s27, 0
      %p206 = por %p204, %p205
      %p207 = scmp.le.s32.totalorder 1, %s21
      %p208 = scmp.lt.s32.totalorder %s21, 3
      %p209 = pnand %p207, %p208
      %p210 = pneg %p209
      // Predicated region
      $region9: #{tpu_custom_call.1} parent=5 // pred_check
        _
      $region10: #{tpu_custom_call.1} parent=5 // pred_check_branch
        %212 = sbr.rel (%p209) target = $region12
      $region11: #{tpu_custom_call.1} parent=5 // pred_region
        %s213 = ssub.s32 %s21, 1
        // Predicated region
        $region13: #{tpu_custom_call.1} parent=11 // pred_check
          %p214 = pneg %p108
        $region14: #{tpu_custom_call.1} parent=11 // pred_check_branch
          %216 = sbr.rel (%p214) target = $region16
        $region15: #{tpu_custom_call.1} parent=11 // pred_region
          _
        $region16: #{tpu_custom_call.1} parent=11 // pred_fallthru
          _
        // Predicated region
        $region17: #{tpu_custom_call.1} parent=11 // pred_check
          %p217 = pneg %p129
        $region18: #{tpu_custom_call.1} parent=11 // pred_check_branch
          %219 = sbr.rel (%p217) target = $region20
        $region19: #{tpu_custom_call.1} parent=11 // pred_region
          _
        $region20: #{tpu_custom_call.1} parent=11 // pred_fallthru
          _
        // Predicated region
        $region21: #{tpu_custom_call.1} parent=11 // pred_check
          %p220 = pneg %p150
        $region22: #{tpu_custom_call.1} parent=11 // pred_check_branch
          %222 = sbr.rel (%p220) target = $region24
        $region23: #{tpu_custom_call.1} parent=11 // pred_region
          _
        $region24: #{tpu_custom_call.1} parent=11 // pred_fallthru
          _
        // Predicated region
        $region25: #{tpu_custom_call.1} parent=11 // pred_check
          %p223 = pneg %p171
        $region26: #{tpu_custom_call.1} parent=11 // pred_check_branch
          %225 = sbr.rel (%p223) target = $region28
        $region27: #{tpu_custom_call.1} parent=11 // pred_region
          _
        $region28: #{tpu_custom_call.1} parent=11 // pred_fallthru
          _
      $region12: #{tpu_custom_call.1} parent=5 // pred_fallthru
        _
      %p226 = scmp.lt.s32.totalorder %s21, 2
      // Predicated region
      $region29: #{tpu_custom_call.1} parent=5 // pred_check
        %p227 = pneg %p226
      $region30: #{tpu_custom_call.1} parent=5 // pred_check_branch
        %229 = sbr.rel (%p227) target = $region32
      $region31: #{tpu_custom_call.1} parent=5 // pred_region
        // Predicated region
        $region33: #{tpu_custom_call.1} parent=31 // pred_check
          %p230 = pneg %p55
        $region34: #{tpu_custom_call.1} parent=31 // pred_check_branch
          %232 = sbr.rel (%p230) target = $region36
        $region35: #{tpu_custom_call.1} parent=31 // pred_region
          %s233 = sand.u32 %s45, 1
          %s234 = scalar_lea.sflag [#allocation3], %s233
          %s235 = sand.u32 %s45, 1
          %s236 = smul.addr %s235, 64
          %s237 = scalar_lea.vmem [#allocation2], %s236
          %s238 = smul.u32 8, %s29
          %240 = vsyncadd %s234, 0
          %s241 = smul.addr %s28, 8
          %s242 = sadd.s32 %s238, %s241
          %s243 = smul.addr %s242, 8
          %s244 = scalar_lea.hbm %s0, %s243
          %s245 = sshll.u32 %s244, 4
          %s246 = int_to_ptr.hbm [resolvable:$true] %s245
          %s247 = sshll.u32 %s237, 4
          %s248 = int_to_ptr.vmem [resolvable:$true] %s247
          %253 = dma.hbm_to_vmem [thread:$0]  %s246, 1024, %s248, %s234, 128, 128, 8
        $region36: #{tpu_custom_call.1} parent=31 // pred_fallthru
          _
        // Predicated region
        $region37: #{tpu_custom_call.1} parent=31 // pred_check
          %p254 = pneg %p81
        $region38: #{tpu_custom_call.1} parent=31 // pred_check_branch
          %256 = sbr.rel (%p254) target = $region40
        $region39: #{tpu_custom_call.1} parent=31 // pred_region
          %s257 = sand.u32 %s71, 1
          %s258 = scalar_lea.sflag [#allocation6], %s257
          %s259 = sand.u32 %s71, 1
          %s260 = smul.addr %s259, 24
          %s261 = scalar_lea.vmem [#allocation5], %s260
          %263 = vsyncadd %s258, 0
          %s264 = smul.addr %s28, 3
          %s265 = smul.addr %s264, 8
          %s266 = scalar_lea.hbm %s1, %s265
          %s267 = sshll.u32 %s266, 4
          %s268 = int_to_ptr.hbm [resolvable:$true] %s267
          %s269 = sshll.u32 %s261, 4
          %s270 = int_to_ptr.vmem [resolvable:$true] %s269
          %275 = dma.hbm_to_vmem [thread:$0]  %s268, 384, %s270, %s258, 128, 128, 8
        $region40: #{tpu_custom_call.1} parent=31 // pred_fallthru
          _
      $region32: #{tpu_custom_call.1} parent=5 // pred_fallthru
        _
      %p276 = scmp.le.s32.totalorder 1, %s21
      %p277 = scmp.lt.s32.totalorder %s21, 3
      %p278 = pnand %p276, %p277
      %p279 = pneg %p278
      // Predicated region
      $region41: #{tpu_custom_call.1} parent=5 // pred_check
        _
      $region42: #{tpu_custom_call.1} parent=5 // pred_check_branch
        %281 = sbr.rel (%p278) target = $region44
      $region43: #{tpu_custom_call.1} parent=5 // pred_region
        %s282 = ssub.s32 %s21, 1
        %s283 = sand.u32 %s48, 1
        %s284 = scalar_lea.sflag [#allocation3], %s283
        %s285 = sand.u32 %s48, 1
        %s286 = smul.addr %s285, 64
        %s287 = scalar_lea.vmem [#allocation2], %s286
        // Predicated region
        $region45: #{tpu_custom_call.1} parent=43 // pred_check
          %p288 = pneg %p61
        $region46: #{tpu_custom_call.1} parent=43 // pred_check_branch
          %290 = sbr.rel (%p288) target = $region48
        $region47: #{tpu_custom_call.1} parent=43 // pred_region
          %292 = dma.done %s284, 1024
        $region48: #{tpu_custom_call.1} parent=43 // pred_fallthru
          _
        %s293 = sand.u32 %s74, 1
        %s294 = scalar_lea.sflag [#allocation6], %s293
        %s295 = sand.u32 %s74, 1
        %s296 = smul.addr %s295, 24
        %s297 = scalar_lea.vmem [#allocation5], %s296
        // Predicated region
        $region49: #{tpu_custom_call.1} parent=43 // pred_check
          %p298 = pneg %p87
        $region50: #{tpu_custom_call.1} parent=43 // pred_check_branch
          %300 = sbr.rel (%p298) target = $region52
        $region51: #{tpu_custom_call.1} parent=43 // pred_region
          %302 = dma.done %s294, 384
        $region52: #{tpu_custom_call.1} parent=43 // pred_fallthru
          _
        %s303 = sand.u32 %s48, 1
        %s304 = scalar_lea.sflag [#allocation3], %s303
        %s305 = sand.u32 %s48, 1
        %s306 = smul.addr %s305, 64
        %s307 = scalar_lea.vmem [#allocation2], %s306
        %p308 = pneg %p61
        %p309 = pneg %p58
        %s310 = sand.u32 %s74, 1
        %s311 = scalar_lea.sflag [#allocation6], %s310
        %s312 = sand.u32 %s74, 1
        %s313 = smul.addr %s312, 24
        %s314 = scalar_lea.vmem [#allocation5], %s313
        %p315 = pneg %p87
        %p316 = pneg %p84
        %p317 = pneg %p108
        %p318 = pneg %p105
        %p319 = pneg %p129
        %p320 = pneg %p126
        %p321 = pneg %p150
        %p322 = pneg %p147
        %p323 = pneg %p171
        %p324 = pneg %p168
        %p325 = pneg %p199
        %p326 = pneg %p196
        %s327 = sand.u32 %s186, 1
        %s328 = scalar_lea.sflag [#allocation4], %s327
        %s329 = sand.u32 %s186, 1
        %s330 = smul.addr %s329, 24
        %s331 = scalar_lea.vmem [#allocation7], %s330
        %s332 = smul.u32 8, %s31
        %v333 = vld [vmem:[%s287] sm:$0xff]
        %v334 = vld [vmem:[%s287 + $0x8] sm:$0xff]
        %v335 = vld [vmem:[%s287 + $0x10] sm:$0xff]
        %v336 = vld [vmem:[%s287 + $0x18] sm:$0xff]
        %v337 = vld [vmem:[%s287 + $0x20] sm:$0xff]
        %v338 = vld [vmem:[%s287 + $0x28] sm:$0xff]
        %v339 = vld [vmem:[%s287 + $0x30] sm:$0xff]
        %v340 = vld [vmem:[%s287 + $0x38] sm:$0xff]
        %v341 = vld [vmem:[%s2] sm:$0xff]
        %v342 = vld [vmem:[%s2 + $0x8] sm:$0xff]
        %v343 = vld [vmem:[%s3] sm:$0x1]
        %v345 = vperm.slane %v343, 0
        %vm347 = vcmask 130048
        %v349 = vsel %vm347, %v333, 0
        %v352 = vsel %vm347, %v334, 0
        %v355 = vsel %vm347, %v335, 0
        %v358 = vsel %vm347, %v336, 0
        %v361 = vsel %vm347, %v337, 0
        %v364 = vsel %vm347, %v338, 0
        %v367 = vsel %vm347, %v339, 0
        %v370 = vsel %vm347, %v340, 0
        %372 = vmatpush.msra.mxu0 0.0
        %373 = vmatpush.msra.mxu0 0.0
        %374 = vmatpush.msra.mxu0 0.0
        %375 = vmatpush.msra.mxu0 0.0
        %376 = vmatpush.msra.mxu0 0.0
        %377 = vmatpush.msra.mxu0 0.0
        %378 = vmatpush.msra.mxu0 0.0
        %379 = vmatpush.msra.mxu0 0.0
        %380 = vmatpush.msra.mxu0 0.0
        %381 = vmatpush.msra.mxu0 0.0
        %382 = vmatpush.msra.mxu0 0.0
        %383 = vmatpush.msra.mxu0 0.0
        %384 = vmatpush.msra.mxu0 0.0
        %385 = vmatpush.msra.mxu0 0.0
        %386 = vmatpush.msra.mxu0 %v342
        %387 = vmatpush.msra.mxu0 %v341
        %388 = vmatmul.f32.gmra.mxu0 %v349
        %v389 = vpop.f32.mrf.mxu0
        %v390 = vadd.f32 %v345, %v389
        %391 = vmatmul.f32.gmra.mxu0 %v352
        %v392 = vpop.f32.mrf.mxu0
        %v393 = vadd.f32 %v345, %v392
        %394 = vmatmul.f32.gmra.mxu0 %v355
        %v395 = vpop.f32.mrf.mxu0
        %v396 = vadd.f32 %v345, %v395
        %397 = vmatmul.f32.gmra.mxu0 %v358
        %v398 = vpop.f32.mrf.mxu0
        %v399 = vadd.f32 %v345, %v398
        %400 = vmatmul.f32.gmra.mxu0 %v361
        %v401 = vpop.f32.mrf.mxu0
        %v402 = vadd.f32 %v345, %v401
        %403 = vmatmul.f32.gmra.mxu0 %v364
        %v404 = vpop.f32.mrf.mxu0
        %v405 = vadd.f32 %v345, %v404
        %406 = vmatmul.f32.gmra.mxu0 %v367
        %v407 = vpop.f32.mrf.mxu0
        %v408 = vadd.f32 %v345, %v407
        %409 = vmatmul.f32.gmra.mxu0 %v370
        %v410 = vpop.f32.mrf.mxu0
        %v411 = vadd.f32 %v345, %v410
        %412 = vdwg.mxu0
        %v413 = vmax.f32 %v390, 0.0
        %v414 = vmax.f32 %v393, 0.0
        %v415 = vmax.f32 %v396, 0.0
        %v416 = vmax.f32 %v399, 0.0
        %v417 = vmax.f32 %v402, 0.0
        %v418 = vmax.f32 %v405, 0.0
        %v419 = vmax.f32 %v408, 0.0
        %v420 = vmax.f32 %v411, 0.0
        %v421 = vld [vmem:[%s4] sm:$0xff]
        %v422 = vld [vmem:[%s4 + $0x8] sm:$0xff]
        %v423 = vld [vmem:[%s5] sm:$0x1]
        %v425 = vperm.slane %v423, 0
        %v428 = vsel %vm347, %v413, 0
        %v431 = vsel %vm347, %v414, 0
        %v434 = vsel %vm347, %v415, 0
        %v437 = vsel %vm347, %v416, 0
        %v440 = vsel %vm347, %v417, 0
        %v443 = vsel %vm347, %v418, 0
        %v446 = vsel %vm347, %v419, 0
        %v449 = vsel %vm347, %v420, 0
        %451 = vmatpush.msra.mxu0 0.0
        %452 = vmatpush.msra.mxu0 0.0
        %453 = vmatpush.msra.mxu0 0.0
        %454 = vmatpush.msra.mxu0 0.0
        %455 = vmatpush.msra.mxu0 0.0
        %456 = vmatpush.msra.mxu0 0.0
        %457 = vmatpush.msra.mxu0 0.0
        %458 = vmatpush.msra.mxu0 0.0
        %459 = vmatpush.msra.mxu0 0.0
        %460 = vmatpush.msra.mxu0 0.0
        %461 = vmatpush.msra.mxu0 0.0
        %462 = vmatpush.msra.mxu0 0.0
        %463 = vmatpush.msra.mxu0 0.0
        %464 = vmatpush.msra.mxu0 0.0
        %465 = vmatpush.msra.mxu0 %v422
        %466 = vmatpush.msra.mxu0 %v421
        %467 = vmatmul.f32.gmra.mxu0 %v428
        %v468 = vpop.f32.mrf.mxu0
        %v469 = vadd.f32 %v425, %v468
        %470 = vmatmul.f32.gmra.mxu0 %v431
        %v471 = vpop.f32.mrf.mxu0
        %v472 = vadd.f32 %v425, %v471
        %473 = vmatmul.f32.gmra.mxu0 %v434
        %v474 = vpop.f32.mrf.mxu0
        %v475 = vadd.f32 %v425, %v474
        %476 = vmatmul.f32.gmra.mxu0 %v437
        %v477 = vpop.f32.mrf.mxu0
        %v478 = vadd.f32 %v425, %v477
        %479 = vmatmul.f32.gmra.mxu0 %v440
        %v480 = vpop.f32.mrf.mxu0
        %v481 = vadd.f32 %v425, %v480
        %482 = vmatmul.f32.gmra.mxu0 %v443
        %v483 = vpop.f32.mrf.mxu0
        %v484 = vadd.f32 %v425, %v483
        %485 = vmatmul.f32.gmra.mxu0 %v446
        %v486 = vpop.f32.mrf.mxu0
        %v487 = vadd.f32 %v425, %v486
        %488 = vmatmul.f32.gmra.mxu0 %v449
        %v489 = vpop.f32.mrf.mxu0
        %v490 = vadd.f32 %v425, %v489
        %491 = vdwg.mxu0
        %v492 = vld [vmem:[%s297] sm:$0xff]
        %v493 = vmul.f32 %v469, %v492
        %v494 = vmul.f32 %v472, %v492
        %v495 = vmul.f32 %v475, %v492
        %v496 = vmul.f32 %v478, %v492
        %v497 = vmul.f32 %v481, %v492
        %v498 = vmul.f32 %v484, %v492
        %v499 = vmul.f32 %v487, %v492
        %v500 = vmul.f32 %v490, %v492
        %vm501 = vcmask 64512
        %v502 = vsel %vm501, %v493, 0.0
        %v503 = vrot.slane %v502, 4
        %v504 = vadd.f32 %v502, %v503
        %v505 = vrot.slane %v504, 2
        %v506 = vadd.f32 %v504, %v505
        %v507 = vrot.slane %v506, 1
        %v508 = vadd.f32 %v506, %v507
        %v509 = vsel %vm501, %v494, 0.0
        %v510 = vrot.slane %v509, 4
        %v511 = vadd.f32 %v509, %v510
        %v512 = vrot.slane %v511, 2
        %v513 = vadd.f32 %v511, %v512
        %v514 = vrot.slane %v513, 1
        %v515 = vadd.f32 %v513, %v514
        %v516 = vsel %vm501, %v495, 0.0
        %v517 = vrot.slane %v516, 4
        %v518 = vadd.f32 %v516, %v517
        %v519 = vrot.slane %v518, 2
        %v520 = vadd.f32 %v518, %v519
        %v521 = vrot.slane %v520, 1
        %v522 = vadd.f32 %v520, %v521
        %v523 = vsel %vm501, %v496, 0.0
        %v524 = vrot.slane %v523, 4
        %v525 = vadd.f32 %v523, %v524
        %v526 = vrot.slane %v525, 2
        %v527 = vadd.f32 %v525, %v526
        %v528 = vrot.slane %v527, 1
        %v529 = vadd.f32 %v527, %v528
        %v530 = vsel %vm501, %v497, 0.0
        %v531 = vrot.slane %v530, 4
        %v532 = vadd.f32 %v530, %v531
        %v533 = vrot.slane %v532, 2
        %v534 = vadd.f32 %v532, %v533
        %v535 = vrot.slane %v534, 1
        %v536 = vadd.f32 %v534, %v535
        %v537 = vsel %vm501, %v498, 0.0
        %v538 = vrot.slane %v537, 4
        %v539 = vadd.f32 %v537, %v538
        %v540 = vrot.slane %v539, 2
        %v541 = vadd.f32 %v539, %v540
        %v542 = vrot.slane %v541, 1
        %v543 = vadd.f32 %v541, %v542
        %v544 = vsel %vm501, %v499, 0.0
        %v545 = vrot.slane %v544, 4
        %v546 = vadd.f32 %v544, %v545
        %v547 = vrot.slane %v546, 2
        %v548 = vadd.f32 %v546, %v547
        %v549 = vrot.slane %v548, 1
        %v550 = vadd.f32 %v548, %v549
        %v551 = vsel %vm501, %v500, 0.0
        %v552 = vrot.slane %v551, 4
        %v553 = vadd.f32 %v551, %v552
        %v554 = vrot.slane %v553, 2
        %v555 = vadd.f32 %v553, %v554
        %v556 = vrot.slane %v555, 1
        %v557 = vadd.f32 %v555, %v556
        %vm566 = vcmask 1041409
        %v567 = vsel %vm566, %v515, %v508
        %vm568 = vcmask 1042434
        %v569 = vsel %vm568, %v522, %v567
        %vm570 = vcmask 1043459
        %v571 = vsel %vm570, %v529, %v569
        %vm572 = vcmask 1044484
        %v573 = vsel %vm572, %v536, %v571
        %vm574 = vcmask 1045509
        %v575 = vsel %vm574, %v543, %v573
        %vm576 = vcmask 1046534
        %v577 = vsel %vm576, %v550, %v575
        %vm578 = vcmask 1047559
        %v579 = vsel %vm578, %v557, %v577
        %581 = vst.msk [vmem:[%s331] sm:$0xff] %vm501, %v579
        %s582 = scalar_lea.vmem %s297, 8 [#allocation5]
        %v583 = vld [vmem:[%s582] sm:$0xff]
        %v584 = vmul.f32 %v469, %v583
        %v585 = vmul.f32 %v472, %v583
        %v586 = vmul.f32 %v475, %v583
        %v587 = vmul.f32 %v478, %v583
        %v588 = vmul.f32 %v481, %v583
        %v589 = vmul.f32 %v484, %v583
        %v590 = vmul.f32 %v487, %v583
        %v591 = vmul.f32 %v490, %v583
        %v592 = vsel %vm501, %v584, 0.0
        %v593 = vrot.slane %v592, 4
        %v594 = vadd.f32 %v592, %v593
        %v595 = vrot.slane %v594, 2
        %v596 = vadd.f32 %v594, %v595
        %v597 = vrot.slane %v596, 1
        %v598 = vadd.f32 %v596, %v597
        %v599 = vsel %vm501, %v585, 0.0
        %v600 = vrot.slane %v599, 4
        %v601 = vadd.f32 %v599, %v600
        %v602 = vrot.slane %v601, 2
        %v603 = vadd.f32 %v601, %v602
        %v604 = vrot.slane %v603, 1
        %v605 = vadd.f32 %v603, %v604
        %v606 = vsel %vm501, %v586, 0.0
        %v607 = vrot.slane %v606, 4
        %v608 = vadd.f32 %v606, %v607
        %v609 = vrot.slane %v608, 2
        %v610 = vadd.f32 %v608, %v609
        %v611 = vrot.slane %v610, 1
        %v612 = vadd.f32 %v610, %v611
        %v613 = vsel %vm501, %v587, 0.0
        %v614 = vrot.slane %v613, 4
        %v615 = vadd.f32 %v613, %v614
        %v616 = vrot.slane %v615, 2
        %v617 = vadd.f32 %v615, %v616
        %v618 = vrot.slane %v617, 1
        %v619 = vadd.f32 %v617, %v618
        %v620 = vsel %vm501, %v588, 0.0
        %v621 = vrot.slane %v620, 4
        %v622 = vadd.f32 %v620, %v621
        %v623 = vrot.slane %v622, 2
        %v624 = vadd.f32 %v622, %v623
        %v625 = vrot.slane %v624, 1
        %v626 = vadd.f32 %v624, %v625
        %v627 = vsel %vm501, %v589, 0.0
        %v628 = vrot.slane %v627, 4
        %v629 = vadd.f32 %v627, %v628
        %v630 = vrot.slane %v629, 2
        %v631 = vadd.f32 %v629, %v630
        %v632 = vrot.slane %v631, 1
        %v633 = vadd.f32 %v631, %v632
        %v634 = vsel %vm501, %v590, 0.0
        %v635 = vrot.slane %v634, 4
        %v636 = vadd.f32 %v634, %v635
        %v637 = vrot.slane %v636, 2
        %v638 = vadd.f32 %v636, %v637
        %v639 = vrot.slane %v638, 1
        %v640 = vadd.f32 %v638, %v639
        %v641 = vsel %vm501, %v591, 0.0
        %v642 = vrot.slane %v641, 4
        %v643 = vadd.f32 %v641, %v642
        %v644 = vrot.slane %v643, 2
        %v645 = vadd.f32 %v643, %v644
        %v646 = vrot.slane %v645, 1
        %v647 = vadd.f32 %v645, %v646
        %v656 = vsel %vm566, %v605, %v598
        %v657 = vsel %vm568, %v612, %v656
        %v658 = vsel %vm570, %v619, %v657
        %v659 = vsel %vm572, %v626, %v658
        %v660 = vsel %vm574, %v633, %v659
        %v661 = vsel %vm576, %v640, %v660
        %v662 = vsel %vm578, %v647, %v661
        %s664 = scalar_lea.vmem %s331, 8 [#allocation7]
        %665 = vst.msk [vmem:[%s664] sm:$0xff] %vm501, %v662
        %s666 = scalar_lea.vmem %s297, 16 [#allocation5]
        %v667 = vld [vmem:[%s666] sm:$0xff]
        %v668 = vmul.f32 %v469, %v667
        %v669 = vmul.f32 %v472, %v667
        %v670 = vmul.f32 %v475, %v667
        %v671 = vmul.f32 %v478, %v667
        %v672 = vmul.f32 %v481, %v667
        %v673 = vmul.f32 %v484, %v667
        %v674 = vmul.f32 %v487, %v667
        %v675 = vmul.f32 %v490, %v667
        %v676 = vsel %vm501, %v668, 0.0
        %v677 = vrot.slane %v676, 4
        %v678 = vadd.f32 %v676, %v677
        %v679 = vrot.slane %v678, 2
        %v680 = vadd.f32 %v678, %v679
        %v681 = vrot.slane %v680, 1
        %v682 = vadd.f32 %v680, %v681
        %v683 = vsel %vm501, %v669, 0.0
        %v684 = vrot.slane %v683, 4
        %v685 = vadd.f32 %v683, %v684
        %v686 = vrot.slane %v685, 2
        %v687 = vadd.f32 %v685, %v686
        %v688 = vrot.slane %v687, 1
        %v689 = vadd.f32 %v687, %v688
        %v690 = vsel %vm501, %v670, 0.0
        %v691 = vrot.slane %v690, 4
        %v692 = vadd.f32 %v690, %v691
        %v693 = vrot.slane %v692, 2
        %v694 = vadd.f32 %v692, %v693
        %v695 = vrot.slane %v694, 1
        %v696 = vadd.f32 %v694, %v695
        %v697 = vsel %vm501, %v671, 0.0
        %v698 = vrot.slane %v697, 4
        %v699 = vadd.f32 %v697, %v698
        %v700 = vrot.slane %v699, 2
        %v701 = vadd.f32 %v699, %v700
        %v702 = vrot.slane %v701, 1
        %v703 = vadd.f32 %v701, %v702
        %v704 = vsel %vm501, %v672, 0.0
        %v705 = vrot.slane %v704, 4
        %v706 = vadd.f32 %v704, %v705
        %v707 = vrot.slane %v706, 2
        %v708 = vadd.f32 %v706, %v707
        %v709 = vrot.slane %v708, 1
        %v710 = vadd.f32 %v708, %v709
        %v711 = vsel %vm501, %v673, 0.0
        %v712 = vrot.slane %v711, 4
        %v713 = vadd.f32 %v711, %v712
        %v714 = vrot.slane %v713, 2
        %v715 = vadd.f32 %v713, %v714
        %v716 = vrot.slane %v715, 1
        %v717 = vadd.f32 %v715, %v716
        %v718 = vsel %vm501, %v674, 0.0
        %v719 = vrot.slane %v718, 4
        %v720 = vadd.f32 %v718, %v719
        %v721 = vrot.slane %v720, 2
        %v722 = vadd.f32 %v720, %v721
        %v723 = vrot.slane %v722, 1
        %v724 = vadd.f32 %v722, %v723
        %v725 = vsel %vm501, %v675, 0.0
        %v726 = vrot.slane %v725, 4
        %v727 = vadd.f32 %v725, %v726
        %v728 = vrot.slane %v727, 2
        %v729 = vadd.f32 %v727, %v728
        %v730 = vrot.slane %v729, 1
        %v731 = vadd.f32 %v729, %v730
        %v740 = vsel %vm566, %v689, %v682
        %v741 = vsel %vm568, %v696, %v740
        %v742 = vsel %vm570, %v703, %v741
        %v743 = vsel %vm572, %v710, %v742
        %v744 = vsel %vm574, %v717, %v743
        %v745 = vsel %vm576, %v724, %v744
        %v746 = vsel %vm578, %v731, %v745
        %s748 = scalar_lea.vmem %s331, 16 [#allocation7]
        %749 = vst.msk [vmem:[%s748] sm:$0xff] %vm501, %v746
        %s750 = sand.u32 %s186, 1
        %s751 = scalar_lea.sflag [#allocation4], %s750
        %s752 = sand.u32 %s186, 1
        %s753 = smul.addr %s752, 24
        %s754 = scalar_lea.vmem [#allocation7], %s753
        // Predicated region
        $region53: #{tpu_custom_call.1} parent=43 // pred_check
          %p755 = pneg %p196
        $region54: #{tpu_custom_call.1} parent=43 // pred_check_branch
          %757 = sbr.rel (%p755) target = $region56
        $region55: #{tpu_custom_call.1} parent=43 // pred_region
          %759 = vsyncadd %s751, 0
          %s760 = smul.addr %s30, 3
          %s761 = sadd.s32 %s31, %s760
          %s762 = smul.addr %s761, 8
          %s763 = scalar_lea.hbm %s6, %s762
          %s764 = sshll.u32 %s754, 4
          %s765 = int_to_ptr.vmem [resolvable:$true] %s764
          %s766 = sshll.u32 %s763, 4
          %s767 = int_to_ptr.hbm [resolvable:$true] %s766
          %772 = dma.vmem_to_hbm [thread:$0]  %s765, 384, %s767, %s751, 128, 128, 8
        $region56: #{tpu_custom_call.1} parent=43 // pred_fallthru
          _
      $region44: #{tpu_custom_call.1} parent=5 // pred_fallthru
        _
      %p773 = scmp.le.s32.totalorder 2, %s21
      // Predicated region
      $region57: #{tpu_custom_call.1} parent=5 // pred_check
        %p774 = pneg %p773
      $region58: #{tpu_custom_call.1} parent=5 // pred_check_branch
        %776 = sbr.rel (%p774) target = $region60
      $region59: #{tpu_custom_call.1} parent=5 // pred_region
        %s777 = ssub.s32 %s21, 2
        // Predicated region
        $region61: #{tpu_custom_call.1} parent=59 // pred_check
          %p778 = pneg %p202
        $region62: #{tpu_custom_call.1} parent=59 // pred_check_branch
          %780 = sbr.rel (%p778) target = $region64
        $region63: #{tpu_custom_call.1} parent=59 // pred_region
          %s781 = sand.u32 %s187, 1
          %s782 = scalar_lea.sflag [#allocation4], %s781
          %s783 = sand.u32 %s187, 1
          %s784 = smul.addr %s783, 24
          %s785 = scalar_lea.vmem [#allocation7], %s784
          %787 = dma.done %s782, 384
        $region64: #{tpu_custom_call.1} parent=59 // pred_fallthru
          _
      $region60: #{tpu_custom_call.1} parent=5 // pred_fallthru
        _
    $region6: #{tpu_custom_call.1} parent=1 // loop_footer
      %s25 = sadd.s32 1, %s21
    $region7: #{tpu_custom_call.1} parent=1 // loop_footer_branch
      %20 = sbr.rel target = $region3
    $region8: #{tpu_custom_call.1} parent=1 // loop_exit
      _
    %788 = vsyncpa [#allocation3], 1
    %s789 = scalar_lea.sflag [#allocation3], 1
    %790 = vsyncpa %s789, 1
    %791 = vsyncpa [#allocation6], 1
    %s792 = scalar_lea.sflag [#allocation6], 1
    %793 = vsyncpa %s792, 1
    %794 = vsyncpa [#allocation4], 1
    %s795 = scalar_lea.sflag [#allocation4], 1
    %796 = vsyncpa %s795, 1

</llo_original>
